<compile_context>
chip_gen: v6e
topology: v6e:2x2x1
jax: 0.10.0
libtpu: 0.0.40
codegen_flags: <defaults>
</compile_context>

<pallas_src>
import functools

import jax
import jax.numpy as jnp
from jax import lax
from jax.experimental import pallas as pl
from jax.experimental.pallas import tpu as pltpu


# ----------------------------- Pallas kernel -------------------------------

def _embeddings_kernel(patches_ref, w_ref, pos_ref, gamma_ref, beta_ref, out_ref):
    # patches_ref: (1, TL, K) bf16   w_ref: (K, D) bf16
    # pos_ref:     (TL, D)   f32     gamma/beta: (1, D) f32
    # out_ref:     (1, TL, D)
    patches = patches_ref[0]                                     # (TL, K) bf16

    # Patch projection (Conv2d as matmul). bf16 operands, f32 accumulation.
    proj = jnp.dot(patches, w_ref[...],
                   preferred_element_type=jnp.float32)           # (TL, D) f32

    # Bias + class token already folded into pos_ref in the wrapper.
    seq = proj + pos_ref[...]                                    # (TL, D)

    # LayerNorm over the embedding dim (eps matches PyTorch default).
    mean = jnp.mean(seq, axis=-1, keepdims=True)
    cen = seq - mean
    var = jnp.mean(cen * cen, axis=-1, keepdims=True)
    normed = cen * lax.rsqrt(var + 1e-5)
    out_ref[0] = (normed * gamma_ref[...] + beta_ref[...]).astype(out_ref.dtype)


# ------------------------------- wrappers ------------------------------------

def _extract_patches(x, patch_size, stride):
    """NCHW image -> (N, Ho*Wo, C*P*P) bf16 with (c, kh, kw) ordering."""
    N, C, Himg, Wimg = x.shape
    P = patch_size
    Ho = (Himg - P) // stride + 1
    Wo = (Wimg - P) // stride + 1
    if stride == P and Himg % P == 0 and Wimg % P == 0:
        # Non-overlapping patches: pure reshape/transpose, no gather needed.
        xp = x.reshape(N, C, Ho, P, Wo, P)
    else:
        idx_h = (jnp.arange(Ho) * stride)[:, None] + jnp.arange(P)[None, :]   # (Ho, P)
        idx_w = (jnp.arange(Wo) * stride)[:, None] + jnp.arange(P)[None, :]   # (Wo, P)
        xp = jnp.take(x, idx_h.reshape(-1), axis=2).reshape(N, C, Ho, P, Wimg)
        xp = jnp.take(xp, idx_w.reshape(-1), axis=4).reshape(N, C, Ho, P, Wo, P)
    # (N, C, Ho, P, Wo, P) -> (N, Ho, Wo, C, P, P) -> (N, HW, C*P*P), cast to bf16
    xp = xp.transpose(0, 2, 4, 1, 3, 5).reshape(N, Ho * Wo, C * P * P)
    return xp.astype(jnp.bfloat16), Ho, Wo


def prepare_embedding_params(params):
    """One-time (outside jit / per-call loop) parameter re-layout."""
    conv_w = params["conv_w"]          # (D, C, P, P) PyTorch OIHW
    conv_b = params["conv_b"]          # (D,)
    D, C, P, _ = conv_w.shape
    proj_w = conv_w.reshape(D, C * P * P).T.astype(jnp.bfloat16)   # (K, D) bf16
    # Fold class token into pos[0] and conv bias into pos[1:].
    pos = params["pos_emb"].astype(jnp.float32)                    # (L, D)
    pos_eff = pos.at[0].add(params["class_token"].reshape(-1).astype(jnp.float32))
    pos_eff = pos_eff.at[1:].add(conv_b.astype(jnp.float32))
    return {
        "proj_w": proj_w,
        "pos_eff": pos_eff,
        "ln_gamma": params["ln_gamma"].reshape(1, D).astype(jnp.float32),
        "ln_beta": params["ln_beta"].reshape(1, D).astype(jnp.float32),
    }


@functools.partial(jax.jit,
                   static_argnames=("patch_size", "stride", "tile_l", "out_dtype"))
def embeddings_forward(x, prep, *, patch_size, stride, tile_l=256,
                       out_dtype=jnp.float32):
    """x: (N, 3, H, W) NCHW.  Returns (N, L, D), L = H'*W' + 1 (class token first)."""
    proj_w = prep["proj_w"]            # (K, D) bf16
    pos_eff = prep["pos_eff"]          # (L, D) f32 (bias + class token folded in)
    gamma = prep["ln_gamma"]           # (1, D)
    beta = prep["ln_beta"]             # (1, D)
    K, D = proj_w.shape

    patches, Ho, Wo = _extract_patches(x, patch_size, stride)     # (N, HW, K) bf16
    N, HW, _ = patches.shape
    L = HW + 1
    assert pos_eff.shape[0] == L, "num_embeddings must equal H'*W' + 1"

    # Zero row 0 -> class-token slot (0 @ W == 0, then + (cls + pos[0])).
    patches = jnp.pad(patches, ((0, 0), (1, 0), (0, 0)))          # (N, L, K) bf16

    # Sequence tiling: multiples of 8 sublanes; full dim if it already fits.
    if L <= tile_l:
        tl = L
    else:
        assert tile_l % 8 == 0, "tile_l must be a multiple of 8"
        tl = tile_l
    grid_l = pl.cdiv(L, tl)

    out = pl.pallas_call(
        _embeddings_kernel,
        out_shape=jax.ShapeDtypeStruct((N, L, D), out_dtype),
        grid_spec=pltpu.PrefetchScalarGridSpec(
            num_scalar_prefetch=0,
            grid=(N, grid_l),
            in_specs=[
                pl.BlockSpec((1, tl, K), lambda n, t: (n, t, 0)),   # patches
                pl.BlockSpec((K, D), lambda n, t: (0, 0)),          # weight (resident)
                pl.BlockSpec((tl, D), lambda n, t: (t, 0)),         # pos (+bias/cls)
                pl.BlockSpec((1, D), lambda n, t: (0, 0)),          # ln gamma
                pl.BlockSpec((1, D), lambda n, t: (0, 0)),          # ln beta
            ],
            out_specs=pl.BlockSpec((1, tl, D), lambda n, t: (n, t, 0)),
        ),
        compiler_params=pltpu.CompilerParams(
            dimension_semantics=("parallel", "parallel"),
            vmem_limit_bytes=32 * 1024 * 1024),
    )(patches, proj_w, pos_eff, gamma, beta)
    return out


# --------------------------- plain-JAX reference ----------------------------

def embeddings_reference(x, params, *, patch_size, stride):
    conv_w, conv_b = params["conv_w"], params["conv_b"]
    img = lax.conv_general_dilated(
        x, conv_w, window_strides=(stride, stride), padding="VALID",
        dimension_numbers=("NCHW", "OIHW", "NCHW"))
    img = img + conv_b[None, :, None, None]
    N, D, H, W = img.shape
    img = img.reshape(N, D, H * W).transpose(0, 2, 1)            # (N, HW, D)
    cls = jnp.broadcast_to(params["class_token"], (N, 1, D))
    seq = jnp.concatenate([cls, img], axis=1)                    # (N, L, D)
    seq = seq + params["pos_emb"][None, :, :]
    mean = jnp.mean(seq, axis=-1, keepdims=True)
    var = jnp.mean((seq - mean) ** 2, axis=-1, keepdims=True)
    normed = (seq - mean) / jnp.sqrt(var + 1e-5)
    return normed * params["ln_gamma"] + params["ln_beta"]


# --------------------------------- main --------------------------------------

if __name__ == "__main__":
    # Small ViT-ish config: 16x16 RGB image, 4x4 patches, stride 4.
    N, C, IMG = 2, 3, 16
    PATCH, STRIDE = 4, 4
    D = 32
    HW = ((IMG - PATCH) // STRIDE + 1) ** 2       # 16 patches
    L = HW + 1                                    # num_embeddings = 17

    key = jax.random.PRNGKey(0)
    k_x, k_w, k_b, k_pos = jax.random.split(key, 4)

    x = jax.random.normal(k_x, (N, C, IMG, IMG), dtype=jnp.float32)

    params = {
        "conv_w": jax.random.normal(k_w, (D, C, PATCH, PATCH), jnp.float32) * 0.05,
        "conv_b": jax.random.normal(k_b, (D,), jnp.float32) * 0.05,
        "class_token": jnp.zeros((1, 1, D), jnp.float32),        # PyTorch init: zeros
        "pos_emb": jax.random.normal(k_pos, (L, D), jnp.float32) * 0.02,
        "ln_gamma": jnp.ones((D,), jnp.float32),
        "ln_beta": jnp.zeros((D,), jnp.float32),
    }

    prep = prepare_embedding_params(params)
    out = embeddings_forward(x, prep, patch_size=PATCH, stride=STRIDE)
    out = jax.block_until_ready(out)

    ref = embeddings_reference(x, params, patch_size=PATCH, stride=STRIDE)
    assert out.shape == (N, L, D), out.shape
    # bf16 MXU operands -> looser tolerance than pure f32 (LN still computed in f32).
    max_err = float(jnp.max(jnp.abs(out - ref)))
    assert jnp.allclose(out, ref, atol=5e-2, rtol=5e-2), max_err

    print("KERNEL_OK")
</pallas_src>

<mosaic_0001>
module attributes {stable_mosaic.version = 11 : i64} {
  func.func @_embeddings_kernel(%arg0: i32, %arg1: i32, %arg2: memref<1x17x48xbf16, #tpu.memory_space<vmem>>, %arg3: memref<48x32xbf16, #tpu.memory_space<vmem>>, %arg4: memref<17x32xf32, #tpu.memory_space<vmem>>, %arg5: memref<1x32xf32, #tpu.memory_space<vmem>>, %arg6: memref<1x32xf32, #tpu.memory_space<vmem>>, %arg7: memref<1x17x32xf32, #tpu.memory_space<vmem>>) attributes {dimension_semantics = [#tpu.dimension_semantics<parallel>, #tpu.dimension_semantics<parallel>], iteration_bounds = array<i64: 2, 1>, scalar_prefetch = 0 : i64, scratch_operands = 0 : i64, tpu.core_type = #tpu.core_type<tc>, window_params = [{transform_indices = @transform_0, window_bounds = array<i64: 1, 17, 48>}, {pipeline_mode = #tpu.pipeline_mode<synchronous>, transform_indices = @transform_1, window_bounds = array<i64: 48, 32>}, {transform_indices = @transform_2, window_bounds = array<i64: 17, 32>}, {pipeline_mode = #tpu.pipeline_mode<synchronous>, transform_indices = @transform_3, window_bounds = array<i64: 1, 32>}, {pipeline_mode = #tpu.pipeline_mode<synchronous>, transform_indices = @transform_4, window_bounds = array<i64: 1, 32>}, {transform_indices = @transform_5, window_bounds = array<i64: 1, 17, 32>}]} {
    %c0 = arith.constant 0 : index
    %c0_0 = arith.constant 0 : index
    %c0_1 = arith.constant 0 : index
    %0 = vector.load %arg2[%c0, %c0_0, %c0_1] : memref<1x17x48xbf16, #tpu.memory_space<vmem>>, vector<1x17x48xbf16>
    %1 = vector.shape_cast %0 : vector<1x17x48xbf16> to vector<17x48xbf16>
    %c0_2 = arith.constant 0 : index
    %c0_3 = arith.constant 0 : index
    %2 = vector.load %arg3[%c0_2, %c0_3] : memref<48x32xbf16, #tpu.memory_space<vmem>>, vector<48x32xbf16>
    %cst = arith.constant dense<0.000000e+00> : vector<17x32xf32>
    %3 = tpu.matmul %1, %2, %cst {dimension_numbers = #tpu.dot_dimension_numbers<[1], [0], [0], [1], [0, 0, 1, 1], [], []>} : vector<17x48xbf16>, vector<48x32xbf16>, vector<17x32xf32> -> vector<17x32xf32>
    %c0_4 = arith.constant 0 : index
    %c0_5 = arith.constant 0 : index
    %4 = vector.load %arg4[%c0_4, %c0_5] : memref<17x32xf32, #tpu.memory_space<vmem>>, vector<17x32xf32>
    %5 = arith.addf %3, %4 : vector<17x32xf32>
    %cst_6 = arith.constant dense<0.000000e+00> : vector<17xf32>
    %6 = vector.multi_reduction <add>, %5, %cst_6 [1] : vector<17x32xf32> to vector<17xf32>
    %7 = vector.shape_cast %6 : vector<17xf32> to vector<17x1xf32>
    %cst_7 = arith.constant 3.200000e+01 : f32
    %8 = vector.broadcast %cst_7 : f32 to vector<17x1xf32>
    %9 = arith.divf %7, %8 : vector<17x1xf32>
    %10 = vector.broadcast %9 : vector<17x1xf32> to vector<17x32xf32>
    %11 = arith.subf %5, %10 : vector<17x32xf32>
    %12 = arith.mulf %11, %11 : vector<17x32xf32>
    %cst_8 = arith.constant dense<0.000000e+00> : vector<17xf32>
    %13 = vector.multi_reduction <add>, %12, %cst_8 [1] : vector<17x32xf32> to vector<17xf32>
    %14 = vector.shape_cast %13 : vector<17xf32> to vector<17x1xf32>
    %cst_9 = arith.constant 3.200000e+01 : f32
    %15 = vector.broadcast %cst_9 : f32 to vector<17x1xf32>
    %16 = arith.divf %14, %15 : vector<17x1xf32>
    %cst_10 = arith.constant 9.99999974E-6 : f32
    %17 = vector.broadcast %cst_10 : f32 to vector<17x1xf32>
    %18 = arith.addf %16, %17 : vector<17x1xf32>
    %19 = math.rsqrt %18 : vector<17x1xf32>
    %20 = vector.broadcast %19 : vector<17x1xf32> to vector<17x32xf32>
    %21 = arith.mulf %11, %20 : vector<17x32xf32>
    %c0_11 = arith.constant 0 : index
    %c0_12 = arith.constant 0 : index
    %22 = vector.load %arg5[%c0_11, %c0_12] : memref<1x32xf32, #tpu.memory_space<vmem>>, vector<1x32xf32>
    %23 = vector.broadcast %22 : vector<1x32xf32> to vector<17x32xf32>
    %24 = arith.mulf %21, %23 : vector<17x32xf32>
    %c0_13 = arith.constant 0 : index
    %c0_14 = arith.constant 0 : index
    %25 = vector.load %arg6[%c0_13, %c0_14] : memref<1x32xf32, #tpu.memory_space<vmem>>, vector<1x32xf32>
    %26 = vector.broadcast %25 : vector<1x32xf32> to vector<17x32xf32>
    %27 = arith.addf %24, %26 : vector<17x32xf32>
    %c0_15 = arith.constant 0 : index
    %c0_16 = arith.constant 0 : index
    %c0_17 = arith.constant 0 : index
    %28 = vector.load %arg7[%c0_15, %c0_16, %c0_17] : memref<1x17x32xf32, #tpu.memory_space<vmem>>, vector<1x17x32xf32>
    %29 = vector.shape_cast %28 : vector<1x17x32xf32> to vector<17x32xf32>
    %30 = vector.shape_cast %27 : vector<17x32xf32> to vector<1x17x32xf32>
    tpu.vector_store %arg7[%c0_15, %c0_16, %c0_17], %30 {strides = array<i32>} : memref<1x17x32xf32, #tpu.memory_space<vmem>>, vector<1x17x32xf32>,
    return
  }
  func.func @transform_0(%arg0: i32, %arg1: i32) -> (i32, i32, i32) {
    %c0_i32 = arith.constant 0 : i32
    %c0_i32_0 = arith.constant 0 : i32
    return %arg0, %arg1, %c0_i32 : i32, i32, i32
  }
  func.func @transform_1(%arg0: i32, %arg1: i32) -> (i32, i32) {
    %c0_i32 = arith.constant 0 : i32
    %c0_i32_0 = arith.constant 0 : i32
    %c0_i32_1 = arith.constant 0 : i32
    return %c0_i32, %c0_i32_0 : i32, i32
  }
  func.func @transform_2(%arg0: i32, %arg1: i32) -> (i32, i32) {
    %c0_i32 = arith.constant 0 : i32
    %c0_i32_0 = arith.constant 0 : i32
    return %arg1, %c0_i32 : i32, i32
  }
  func.func @transform_3(%arg0: i32, %arg1: i32) -> (i32, i32) {
    %c0_i32 = arith.constant 0 : i32
    %c0_i32_0 = arith.constant 0 : i32
    %c0_i32_1 = arith.constant 0 : i32
    return %c0_i32, %c0_i32_0 : i32, i32
  }
  func.func @transform_4(%arg0: i32, %arg1: i32) -> (i32, i32) {
    %c0_i32 = arith.constant 0 : i32
    %c0_i32_0 = arith.constant 0 : i32
    %c0_i32_1 = arith.constant 0 : i32
    return %c0_i32, %c0_i32_0 : i32, i32
  }
  func.func @transform_5(%arg0: i32, %arg1: i32) -> (i32, i32, i32) {
    %c0_i32 = arith.constant 0 : i32
    %c0_i32_0 = arith.constant 0 : i32
    return %arg0, %arg1, %c0_i32 : i32, i32, i32
  }
}

</mosaic_0001>

<llo_original>
// kernel: embeddings_forward.1
$region0: #{embeddings_forward.1}
  #allocation0 [shape = 'u32[]', space=smem, size = 0x4, offset = 0x4, fixed_abs, tag = 'smem constant byte address 0x4 - core index']
  #allocation1 [shape = 'u32[144,128]{1,0:T(1,128)}', space=vmem, size = 0x12000, scoped, tag = 'internal scratch']
  %s0 = inlined_call_operand.vmem [shape: bf16[2,17,48], index: 0, kind: input, shape index: {}]
  %s1 = inlined_call_operand.vmem [shape: bf16[48,32], index: 1, kind: input, shape index: {}]
  %s2 = inlined_call_operand.vmem [shape: f32[17,32], index: 2, kind: input, shape index: {}]
  %s3 = inlined_call_operand.vmem [shape: f32[1,32], index: 3, kind: input, shape index: {}]
  %s4 = inlined_call_operand.vmem [shape: f32[1,32], index: 4, kind: input, shape index: {}]
  %s5 = inlined_call_operand.vmem [shape: f32[2,17,32], index: 5, kind: output, shape index: {}]
  %s6 = sld [smem:[#allocation0]]
  $region53: #{embeddings_forward.1} parent=0
    _
  %s8 = ssub.s32 1, %s6
  %s9 = scalar_select 0, %s8, %s6
  loop: start=0, step=1, limit=4
  $region2: #{embeddings_forward.1} parent=0 // loop_pre_header
    _
  $region3: #{embeddings_forward.1} parent=0 // loop_header
    %s11 = sphi 0, %s15
    %p12 = scmp.ge.s32.totalorder %s11, 4
    %s18 = sphi 0, %s30
    %s19 = sphi 0, %s26
    %s20 = sphi 0, %s18
    %s21 = sphi 0, %s19
    %s22 = sphi 0, %s20
    %s23 = sphi 0, %s21
    %s35 = sphi 0, %s37
    %s38 = sphi 0, %s35
    %s39 = sphi 0, %s38
    %s55 = sphi 0, %s39
    %s59 = sphi 0, %s59
    %s61 = sphi 0, %s59
    %s62 = sphi 0, %s61
    %s76 = sphi 0, %s62
    %s82 = sphi 0, %s84
    %s85 = sphi 0, %s82
    %s86 = sphi 0, %s85
    %s102 = sphi 0, %s86
    %s106 = sphi 0, %s106
    %s108 = sphi 0, %s106
    %s109 = sphi 0, %s108
    %s123 = sphi 0, %s109
    %s127 = sphi 0, %s127
    %s129 = sphi 0, %s127
    %s130 = sphi 0, %s129
    %s144 = sphi 0, %s130
    %s152 = sphi 0, %s154
    %s155 = sphi 0, %s152
    %s156 = sphi 0, %s155
    %s172 = sphi 0, %s156
  $region4: #{embeddings_forward.1} parent=0 // loop_header_branch
    %14 = sbr.rel (%p12) target = $region8
  $region5: #{embeddings_forward.1} parent=0 // loop_body
    %s16 = ssub.s32 %s11, 1
    %s17 = ssub.s32 %s11, 2
    %s24 = sadd.s32 1, %s19
    %p25 = scmp.ge.s32.totalorder %s24, 1
    %s26 = scalar_select %p25, 0, %s24
    %s27 = sadd.s32 1, %s18
    %s28 = scalar_select %p25, %s27, %s18
    %p29 = scmp.ge.s32.totalorder %s28, 2
    %s30 = scalar_select %p29, 0, %s28
    %s31 = ssub.s32 %s18, %s30
    %s32 = ssub.s32 %s19, %s26
    %s33 = sor.u32 %s31, %s32
    %p34 = scmp.eq.s32.totalorder %s33, 0
    %s36 = sadd.s32 %s35, 1
    %s37 = scalar_select %p34, %s35, %s36
    %p40 = pneg %p34
    %p41 = scmp.eq.s32.totalorder %s11, 1
    %p42 = por %p40, %p41
    %p43 = scmp.ne.s32.totalorder %s35, %s38
    %p44 = scmp.eq.s32.totalorder %s11, 0
    %p45 = por %p43, %p44
    %p46 = scmp.ne.s32.totalorder %s35, %s38
    %p47 = scmp.eq.s32.totalorder %s16, 1
    %p48 = por %p46, %p47
    %p49 = scmp.ne.s32.totalorder %s38, %s39
    %p50 = scmp.eq.s32.totalorder %s16, 0
    %p51 = por %p49, %p50
    %p52 = scmp.ne.s32.totalorder %s38, %s39
    %p53 = scmp.eq.s32.totalorder %s17, 1
    %p54 = por %p52, %p53
    %p56 = scmp.ne.s32.totalorder %s39, %s55
    %p57 = scmp.eq.s32.totalorder %s17, 0
    %p58 = por %p56, %p57
    %s60 = sadd.s32 %s59, 1
    %p63 = scmp.eq.s32.totalorder %s11, 1
    %p64 = scmp.ne.s32.totalorder %s59, %s61
    %p65 = scmp.eq.s32.totalorder %s11, 0
    %p66 = por %p64, %p65
    %p67 = scmp.ne.s32.totalorder %s59, %s61
    %p68 = scmp.eq.s32.totalorder %s16, 1
    %p69 = por %p67, %p68
    %p70 = scmp.ne.s32.totalorder %s61, %s62
    %p71 = scmp.eq.s32.totalorder %s16, 0
    %p72 = por %p70, %p71
    %p73 = scmp.ne.s32.totalorder %s61, %s62
    %p74 = scmp.eq.s32.totalorder %s17, 1
    %p75 = por %p73, %p74
    %p77 = scmp.ne.s32.totalorder %s62, %s76
    %p78 = scmp.eq.s32.totalorder %s17, 0
    %p79 = por %p77, %p78
    %s80 = ssub.s32 %s19, %s26
    %p81 = scmp.eq.s32.totalorder %s80, 0
    %s83 = sadd.s32 %s82, 1
    %s84 = scalar_select %p81, %s82, %s83
    %p87 = pneg %p81
    %p88 = scmp.eq.s32.totalorder %s11, 1
    %p89 = por %p87, %p88
    %p90 = scmp.ne.s32.totalorder %s82, %s85
    %p91 = scmp.eq.s32.totalorder %s11, 0
    %p92 = por %p90, %p91
    %p93 = scmp.ne.s32.totalorder %s82, %s85
    %p94 = scmp.eq.s32.totalorder %s16, 1
    %p95 = por %p93, %p94
    %p96 = scmp.ne.s32.totalorder %s85, %s86
    %p97 = scmp.eq.s32.totalorder %s16, 0
    %p98 = por %p96, %p97
    %p99 = scmp.ne.s32.totalorder %s85, %s86
    %p100 = scmp.eq.s32.totalorder %s17, 1
    %p101 = por %p99, %p100
    %p103 = scmp.ne.s32.totalorder %s86, %s102
    %p104 = scmp.eq.s32.totalorder %s17, 0
    %p105 = por %p103, %p104
    %s107 = sadd.s32 %s106, 1
    %p110 = scmp.eq.s32.totalorder %s11, 1
    %p111 = scmp.ne.s32.totalorder %s106, %s108
    %p112 = scmp.eq.s32.totalorder %s11, 0
    %p113 = por %p111, %p112
    %p114 = scmp.ne.s32.totalorder %s106, %s108
    %p115 = scmp.eq.s32.totalorder %s16, 1
    %p116 = por %p114, %p115
    %p117 = scmp.ne.s32.totalorder %s108, %s109
    %p118 = scmp.eq.s32.totalorder %s16, 0
    %p119 = por %p117, %p118
    %p120 = scmp.ne.s32.totalorder %s108, %s109
    %p121 = scmp.eq.s32.totalorder %s17, 1
    %p122 = por %p120, %p121
    %p124 = scmp.ne.s32.totalorder %s109, %s123
    %p125 = scmp.eq.s32.totalorder %s17, 0
    %p126 = por %p124, %p125
    %s128 = sadd.s32 %s127, 1
    %p131 = scmp.eq.s32.totalorder %s11, 1
    %p132 = scmp.ne.s32.totalorder %s127, %s129
    %p133 = scmp.eq.s32.totalorder %s11, 0
    %p134 = por %p132, %p133
    %p135 = scmp.ne.s32.totalorder %s127, %s129
    %p136 = scmp.eq.s32.totalorder %s16, 1
    %p137 = por %p135, %p136
    %p138 = scmp.ne.s32.totalorder %s129, %s130
    %p139 = scmp.eq.s32.totalorder %s16, 0
    %p140 = por %p138, %p139
    %p141 = scmp.ne.s32.totalorder %s129, %s130
    %p142 = scmp.eq.s32.totalorder %s17, 1
    %p143 = por %p141, %p142
    %p145 = scmp.ne.s32.totalorder %s130, %s144
    %p146 = scmp.eq.s32.totalorder %s17, 0
    %p147 = por %p145, %p146
    %s148 = ssub.s32 %s18, %s30
    %s149 = ssub.s32 %s19, %s26
    %s150 = sor.u32 %s148, %s149
    %p151 = scmp.eq.s32.totalorder %s150, 0
    %s153 = sadd.s32 %s152, 1
    %s154 = scalar_select %p151, %s152, %s153
    %p157 = pneg %p151
    %p158 = scmp.eq.s32.totalorder %s11, 1
    %p159 = por %p157, %p158
    %p160 = scmp.ne.s32.totalorder %s152, %s155
    %p161 = scmp.eq.s32.totalorder %s11, 0
    %p162 = por %p160, %p161
    %p163 = scmp.ne.s32.totalorder %s152, %s155
    %p164 = scmp.eq.s32.totalorder %s16, 1
    %p165 = por %p163, %p164
    %p166 = scmp.ne.s32.totalorder %s155, %s156
    %p167 = scmp.eq.s32.totalorder %s16, 0
    %p168 = por %p166, %p167
    %p169 = scmp.ne.s32.totalorder %s155, %s156
    %p170 = scmp.eq.s32.totalorder %s17, 1
    %p171 = por %p169, %p170
    %p173 = scmp.ne.s32.totalorder %s156, %s172
    %p174 = scmp.eq.s32.totalorder %s17, 0
    %p175 = por %p173, %p174
    %p176 = scmp.le.s32.totalorder 1, %s11
    %p177 = scmp.lt.s32.totalorder %s11, 3
    %p178 = pnand %p176, %p177
    %p179 = pneg %p178
    // Predicated region
    $region9: #{embeddings_forward.1} parent=5 // pred_check
      _
    $region10: #{embeddings_forward.1} parent=5 // pred_check_branch
      %181 = sbr.rel (%p178) target = $region12
    $region11: #{embeddings_forward.1} parent=5 // pred_region
      %s182 = ssub.s32 %s11, 1
      // Predicated region
      $region13: #{embeddings_forward.1} parent=11 // pred_check
        %p183 = pneg %p72
      $region14: #{embeddings_forward.1} parent=11 // pred_check_branch
        %185 = sbr.rel (%p183) target = $region16
      $region15: #{embeddings_forward.1} parent=11 // pred_region
        _
      $region16: #{embeddings_forward.1} parent=11 // pred_fallthru
        _
      // Predicated region
      $region17: #{embeddings_forward.1} parent=11 // pred_check
        %p186 = pneg %p98
      $region18: #{embeddings_forward.1} parent=11 // pred_check_branch
        %188 = sbr.rel (%p186) target = $region20
      $region19: #{embeddings_forward.1} parent=11 // pred_region
        %s189 = smul.u32 3, %s21
        %p190 = scmp.lt.s32.totalorder %s189, 2
        %s191 = scalar_select %p190, %s189, 2
        %s192 = smul.addr %s191, 8
        %s193 = scalar_lea.vmem %s2, %s192
        %s194 = smul.u32 3, %s21
      $region20: #{embeddings_forward.1} parent=11 // pred_fallthru
        _
      // Predicated region
      $region21: #{embeddings_forward.1} parent=11 // pred_check
        %p195 = pneg %p119
      $region22: #{embeddings_forward.1} parent=11 // pred_check_branch
        %197 = sbr.rel (%p195) target = $region24
      $region23: #{embeddings_forward.1} parent=11 // pred_region
        _
      $region24: #{embeddings_forward.1} parent=11 // pred_fallthru
        _
      // Predicated region
      $region25: #{embeddings_forward.1} parent=11 // pred_check
        %p198 = pneg %p140
      $region26: #{embeddings_forward.1} parent=11 // pred_check_branch
        %200 = sbr.rel (%p198) target = $region28
      $region27: #{embeddings_forward.1} parent=11 // pred_region
        _
      $region28: #{embeddings_forward.1} parent=11 // pred_fallthru
        _
    $region12: #{embeddings_forward.1} parent=5 // pred_fallthru
      _
    %p201 = scmp.lt.s32.totalorder %s11, 2
    // Predicated region
    $region29: #{embeddings_forward.1} parent=5 // pred_check
      %p202 = pneg %p201
    $region30: #{embeddings_forward.1} parent=5 // pred_check_branch
      %204 = sbr.rel (%p202) target = $region32
    $region31: #{embeddings_forward.1} parent=5 // pred_region
      // Predicated region
      $region33: #{embeddings_forward.1} parent=31 // pred_check
        %p205 = pneg %p45
      $region34: #{embeddings_forward.1} parent=31 // pred_check_branch
        %207 = sbr.rel (%p205) target = $region36
      $region35: #{embeddings_forward.1} parent=31 // pred_region
        %s208 = smul.u32 3, %s19
        %p209 = scmp.lt.s32.totalorder %s18, 1
        %s210 = scalar_select %p209, %s18, 1
        %p211 = scmp.lt.s32.totalorder %s208, 2
        %s212 = scalar_select %p211, %s208, 2
        %s213 = smul.addr %s210, 3
        %s214 = sadd.s32 %s212, %s213
        %s215 = smul.addr %s214, 4
        %s216 = scalar_lea.vmem %s0, %s215
        %s217 = smul.u32 3, %s19
      $region36: #{embeddings_forward.1} parent=31 // pred_fallthru
        _
    $region32: #{embeddings_forward.1} parent=5 // pred_fallthru
      _
    %p218 = scmp.le.s32.totalorder 1, %s11
    %p219 = scmp.lt.s32.totalorder %s11, 3
    %p220 = pnand %p218, %p219
    %p221 = pneg %p220
    // Predicated region
    $region37: #{embeddings_forward.1} parent=5 // pred_check
      _
    $region38: #{embeddings_forward.1} parent=5 // pred_check_branch
      %223 = sbr.rel (%p220) target = $region40
    $region39: #{embeddings_forward.1} parent=5 // pred_region
      %s224 = ssub.s32 %s11, 1
      %s225 = smul.u32 3, %s21
      %p226 = scmp.lt.s32.totalorder %s20, 1
      %s227 = scalar_select %p226, %s20, 1
      %p228 = scmp.lt.s32.totalorder %s225, 2
      %s229 = scalar_select %p228, %s225, 2
      %s230 = smul.addr %s227, 3
      %s231 = sadd.s32 %s229, %s230
      %s232 = smul.addr %s231, 4
      %s233 = scalar_lea.vmem %s0, %s232
      %p234 = pneg %p51
      %p235 = pneg %p48
      %p236 = pneg %p72
      %p237 = pneg %p69
      %s238 = smul.u32 3, %s21
      %p239 = scmp.lt.s32.totalorder %s238, 2
      %s240 = scalar_select %p239, %s238, 2
      %s241 = smul.addr %s240, 8
      %s242 = scalar_lea.vmem %s2, %s241
      %p243 = pneg %p98
      %p244 = pneg %p95
      %p245 = pneg %p119
      %p246 = pneg %p116
      %p247 = pneg %p140
      %p248 = pneg %p137
      %p249 = pneg %p168
      %p250 = pneg %p165
      %s251 = smul.u32 3, %s21
      %p252 = scmp.lt.s32.totalorder %s20, 1
      %s253 = scalar_select %p252, %s20, 1
      %p254 = scmp.lt.s32.totalorder %s251, 2
      %s255 = scalar_select %p254, %s251, 2
      %s256 = smul.addr %s253, 3
      %s257 = sadd.s32 %s255, %s256
      %s258 = smul.addr %s257, 8
      %s259 = scalar_lea.vmem %s5, %s258
      %s260 = smul.u32 3, %s21
      %p261 = scmp.lt.s32.totalorder %s20, 1
      %s262 = scalar_select %p261, %s20, 1
      %p263 = scmp.lt.s32.totalorder %s260, 2
      %s264 = scalar_select %p263, %s260, 2
      %s265 = smul.addr %s262, 3
      %s266 = sadd.s32 %s264, %s265
      %s267 = smul.addr %s266, 4
      %s268 = scalar_lea.vmem %s0, %s267
      %s269 = smul.u32 3, %s21
      %s270 = smul.u32 3, %s21
      %p271 = scmp.lt.s32.totalorder %s270, 2
      %s272 = scalar_select %p271, %s270, 2
      %s273 = smul.addr %s272, 8
      %s274 = scalar_lea.vmem %s2, %s273
      %s275 = smul.u32 3, %s21
      %s276 = smul.u32 3, %s21
      %p277 = scmp.lt.s32.totalorder %s20, 1
      %s278 = scalar_select %p277, %s20, 1
      %p279 = scmp.lt.s32.totalorder %s276, 2
      %s280 = scalar_select %p279, %s276, 2
      %s281 = smul.addr %s278, 3
      %s282 = sadd.s32 %s280, %s281
      %s283 = smul.addr %s282, 8
      %s284 = scalar_lea.vmem %s5, %s283
      %s285 = smul.u32 3, %s21
      %v287 = vld [vmem:[%s268] sm:$0xf]
      %v288 = vld [vmem:[%s268 + $0x4] sm:$0xf]
      %v289 = vld [vmem:[%s268 + $0x8] sm:$0x1]
      %v290 = vld [vmem:[%s1] sm:$0xf]
      %v291 = vld [vmem:[%s1 + $0x4] sm:$0xf]
      %v292 = vld [vmem:[%s1 + $0x8] sm:$0xf]
      %v293 = vld [vmem:[%s1 + $0xc] sm:$0xf]
      %v294 = vld [vmem:[%s1 + $0x10] sm:$0xf]
      %v295 = vld [vmem:[%s1 + $0x14] sm:$0xf]
      %v296 = vld [vmem:[%s274] sm:$0xff]
      %v297 = vld [vmem:[%s274 + $0x8] sm:$0xff]
      %v298 = vld [vmem:[%s274 + $0x10] sm:$0x1]
      %v302 = vunpack.c.l.b16 %v287
      %v303 = vunpack.c.l.b16 %v288
      %v304 = vunpack.c.l.b16 %v289
      %v305 = vpack.c.b16 %v303, %v302
      %v306 = vpack.c.b16 %v304, %v304
      %v313 = vunpack.c.l.b16 %v290
      %v314 = vunpack.c.l.b16 %v291
      %v315 = vunpack.c.l.b16 %v292
      %v316 = vunpack.c.l.b16 %v293
      %v317 = vunpack.c.l.b16 %v294
      %v318 = vunpack.c.l.b16 %v295
      %v319 = vpack.c.b16 %v314, %v313
      %v320 = vpack.c.b16 %v316, %v315
      %v321 = vpack.c.b16 %v318, %v317
      %vm325 = vcmask 392192
      %v327 = vsel %vm325, %v305, 0
      %v330 = vsel %vm325, %v306, 0
      %332 = vmatprep.subr.bf16.mxu0 0
      %333 = vmatpush1.bf16.msra.mxu0 0
      %334 = vmatprep.subr.bf16.mxu0 0
      %335 = vmatpush1.bf16.msra.mxu0 0
      %336 = vmatprep.subr.bf16.mxu0 0
      %337 = vmatpush1.bf16.msra.mxu0 0
      %338 = vmatprep.subr.bf16.mxu0 0
      %339 = vmatpush1.bf16.msra.mxu0 0
      %340 = vmatprep.subr.bf16.mxu0 0
      %341 = vmatpush1.bf16.msra.mxu0 0
      %342 = vmatprep.subr.bf16.mxu0 0
      %343 = vmatpush1.bf16.msra.mxu0 %v321
      %344 = vmatprep.subr.bf16.mxu0 0
      %345 = vmatpush1.bf16.msra.mxu0 %v320
      %346 = vmatprep.subr.bf16.mxu0 0
      %347 = vmatpush1.bf16.msra.mxu0 %v319
      %348 = vmatprep.subr.bf16.mxu0 0
      %349 = vmatpush2.bf16.msra.mxu0 0
      %350 = vmatprep.subr.bf16.mxu0 0
      %351 = vmatpush2.bf16.msra.mxu0 0
      %352 = vmatprep.subr.bf16.mxu0 0
      %353 = vmatpush2.bf16.msra.mxu0 0
      %354 = vmatprep.subr.bf16.mxu0 0
      %355 = vmatpush2.bf16.msra.mxu0 0
      %356 = vmatprep.subr.bf16.mxu0 0
      %357 = vmatpush2.bf16.msra.mxu0 0
      %358 = vmatprep.subr.bf16.mxu0 0
      %359 = vmatpush2.bf16.msra.mxu0 0
      %360 = vmatprep.subr.bf16.mxu0 0
      %361 = vmatpush2.bf16.msra.mxu0 0
      %362 = vmatprep.subr.bf16.mxu0 0
      %363 = vmatpush2.bf16.msra.mxu0 0
      %364 = vmatprep.mubr.bf16.mxu0 0
      %365 = vmatmul.mubr.bf16.gmra.mxu0 %v327
      %v366 = vpop.f32.mrf.mxu0
      %v367 = vadd.f32 %v296, %v366
      %v368 = vpop.f32.mrf.mxu0
      %v369 = vpop.f32.mrf.mxu0
      %v370 = vadd.f32 %v297, %v369
      %v371 = vpop.f32.mrf.mxu0
      %372 = vmatprep.mubr.bf16.mxu0 0
      %373 = vmatmul.mubr.bf16.gmra.mxu0 %v330
      %v374 = vpop.f32.mrf.mxu0
      %v375 = vadd.f32 %v298, %v374
      %v376 = vpop.f32.mrf.mxu0
      %v377 = vpop.f32.mrf.mxu0
      %v378 = vpop.f32.mrf.mxu0
      %379 = vdwg.mxu0
      %vm380 = vcmask 261120
      %v381 = vsel %vm380, %v367, 0.0
      %382 = vadd.xlane.f32.xlu0 %v381
      %v383 = vpop.xlane.xlu0 %382
      %v384 = vsel %vm380, %v370, 0.0
      %385 = vadd.xlane.f32.xlu0 %v384
      %v386 = vpop.xlane.xlu0 %385
      %vm387 = vcmask 253952
      %v388 = vsel %vm387, %v375, 0.0
      %389 = vadd.xlane.f32.xlu0 %v388
      %v390 = vpop.xlane.xlu0 %389
      %v391 = vrcp.pop 32.0
      %v392 = vmul.f32 %v383, %v391
      %v393 = vmul.f32 %v386, %v391
      %v394 = vmul.f32 %v390, %v391
      %v395 = vsub.f32 %v367, %v392
      %v396 = vsub.f32 %v370, %v393
      %v397 = vsub.f32 %v375, %v394
      %v398 = vmul.f32 %v395, %v395
      %v399 = vmul.f32 %v396, %v396
      %v400 = vmul.f32 %v397, %v397
      %v401 = vsel %vm380, %v398, 0.0
      %402 = vadd.xlane.f32.xlu0 %v401
      %v403 = vpop.xlane.xlu0 %402
      %v404 = vsel %vm380, %v399, 0.0
      %405 = vadd.xlane.f32.xlu0 %v404
      %v406 = vpop.xlane.xlu0 %405
      %v407 = vsel %vm387, %v400, 0.0
      %408 = vadd.xlane.f32.xlu0 %v407
      %v409 = vpop.xlane.xlu0 %408
      %v410 = vmul.f32 %v403, %v391
      %v411 = vmul.f32 %v406, %v391
      %v412 = vmul.f32 %v409, %v391
      %v413 = vadd.f32 %v410, 1e-05
      %v414 = vadd.f32 %v411, 1e-05
      %v415 = vadd.f32 %v412, 1e-05
      %v416 = vrsqrt.pop %v413
      %v417 = vrsqrt.pop %v414
      %v418 = vrsqrt.pop %v415
      %v419 = vmul.f32 %v395, %v416
      %v420 = vmul.f32 %v396, %v417
      %v421 = vmul.f32 %v397, %v418
      %v422 = vld [vmem:[%s3] sm:$0x1]
      %v424 = vlaneseq
      %v425 = vshrl.u32 %v424, 7
      %v426 = vsub.s32 0, %v425
      %v427 = vrot.slane %v422, %v426
      %v429 = vmul.f32 %v419, %v427
      %v430 = vmul.f32 %v420, %v427
      %v431 = vmul.f32 %v421, %v427
      %v432 = vld [vmem:[%s4] sm:$0x1]
      %v434 = vlaneseq
      %v435 = vshrl.u32 %v434, 7
      %v436 = vsub.s32 0, %v435
      %v437 = vrot.slane %v432, %v436
      %v439 = vadd.f32 %v429, %v437
      %v440 = vadd.f32 %v430, %v437
      %v441 = vadd.f32 %v431, %v437
      %442 = vst.msk [vmem:[%s284] sm:$0xff] %vm380, %v439
      %443 = vst.msk [vmem:[%s284 + $0x8] sm:$0xff] %vm380, %v440
      %444 = vst.msk [vmem:[%s284 + $0x10] sm:$0x1] %vm387, %v441
      %s445 = smul.u32 3, %s21
      %p446 = scmp.lt.s32.totalorder %s20, 1
      %s447 = scalar_select %p446, %s20, 1
      %p448 = scmp.lt.s32.totalorder %s445, 2
      %s449 = scalar_select %p448, %s445, 2
      %s450 = smul.addr %s447, 3
      %s451 = sadd.s32 %s449, %s450
      %s452 = smul.addr %s451, 8
      %s453 = scalar_lea.vmem %s5, %s452
      // Predicated region
      $region41: #{embeddings_forward.1} parent=39 // pred_check
        %p454 = pneg %p165
      $region42: #{embeddings_forward.1} parent=39 // pred_check_branch
        %456 = sbr.rel (%p454) target = $region44
      $region43: #{embeddings_forward.1} parent=39 // pred_region
        %s457 = smul.u32 3, %s21
      $region44: #{embeddings_forward.1} parent=39 // pred_fallthru
        _
    $region40: #{embeddings_forward.1} parent=5 // pred_fallthru
      _
    %p458 = scmp.le.s32.totalorder 2, %s11
    // Predicated region
    $region45: #{embeddings_forward.1} parent=5 // pred_check
      %p459 = pneg %p458
    $region46: #{embeddings_forward.1} parent=5 // pred_check_branch
      %461 = sbr.rel (%p459) target = $region48
    $region47: #{embeddings_forward.1} parent=5 // pred_region
      %s462 = ssub.s32 %s11, 2
      // Predicated region
      $region49: #{embeddings_forward.1} parent=47 // pred_check
        %p463 = pneg %p171
      $region50: #{embeddings_forward.1} parent=47 // pred_check_branch
        %465 = sbr.rel (%p463) target = $region52
      $region51: #{embeddings_forward.1} parent=47 // pred_region
        %s466 = smul.u32 3, %s23
        %p467 = scmp.lt.s32.totalorder %s22, 1
        %s468 = scalar_select %p467, %s22, 1
        %p469 = scmp.lt.s32.totalorder %s466, 2
        %s470 = scalar_select %p469, %s466, 2
        %s471 = smul.addr %s468, 3
        %s472 = sadd.s32 %s470, %s471
        %s473 = smul.addr %s472, 8
        %s474 = scalar_lea.vmem %s5, %s473
      $region52: #{embeddings_forward.1} parent=47 // pred_fallthru
        _
    $region48: #{embeddings_forward.1} parent=5 // pred_fallthru
      _
  $region6: #{embeddings_forward.1} parent=0 // loop_footer
    %s15 = sadd.s32 1, %s11
  $region7: #{embeddings_forward.1} parent=0 // loop_footer_branch
    %10 = sbr.rel target = $region3
  $region8: #{embeddings_forward.1} parent=0 // loop_exit
    _

</llo_original>
